<compile_context>
chip_gen: v5e
topology: v5e:2x2
jax: 0.10.0
libtpu: 0.0.40
codegen_flags: <defaults>
</compile_context>

<pallas_src>
import jax
import jax.numpy as jnp
from jax.experimental import pallas as pl
from jax.experimental.pallas import tpu as pltpu

IN_F = 7              # true input features
H1, H2, H3 = 128, 64, 32
HEAD_W = 7            # age(1) + gender(2) + handedness(2) + class(2)
OUT_W = 8             # fused head width padded 7 -> 8 lanes only
TB_MAX = 2048         # batch tile; peak VMEM ~1.3 MiB, safe on v7x's 64 MiB


def _mlp_kernel(x_ref, w1_ref, b1_ref, w2_ref, b2_ref, w3_ref, b3_ref,
                wh_ref, bh_ref, out_ref):
    # Shared trunk: Linear -> ReLU (x3); Dropout is identity at inference.
    h = jnp.dot(x_ref[...], w1_ref[...], preferred_element_type=jnp.float32)
    h = jnp.maximum(h + b1_ref[...], 0.0)
    h = jnp.dot(h, w2_ref[...], preferred_element_type=jnp.float32)
    h = jnp.maximum(h + b2_ref[...], 0.0)
    h = jnp.dot(h, w3_ref[...], preferred_element_type=jnp.float32)
    h = jnp.maximum(h + b3_ref[...], 0.0)
    # All four heads fused into one (32 -> 8) matmul.  The age-head ReLU is
    # applied in the wrapper on the sliced age column (column 0).
    out_ref[...] = (jnp.dot(h, wh_ref[...], preferred_element_type=jnp.float32)
                    + bh_ref[...])


def init_params(key):
    """Deterministic params matching the PyTorch module's shapes
    (uniform(-1/sqrt(fan_in), 1/sqrt(fan_in)), like nn.Linear default)."""
    def linear(k, fan_in, fan_out):
        kw, kb = jax.random.split(k)
        bound = 1.0 / jnp.sqrt(fan_in)
        w = jax.random.uniform(kw, (fan_in, fan_out), jnp.float32, -bound, bound)
        b = jax.random.uniform(kb, (fan_out,), jnp.float32, -bound, bound)
        return w, b

    keys = jax.random.split(key, 7)
    w1, b1 = linear(keys[0], IN_F, H1)
    w2, b2 = linear(keys[1], H1, H2)
    w3, b3 = linear(keys[2], H2, H3)
    wa, ba = linear(keys[3], H3, 1)   # age_head
    wg, bg = linear(keys[4], H3, 2)   # gender_head
    wh, bh = linear(keys[5], H3, 2)   # handedness_head
    wc, bc = linear(keys[6], H3, 2)   # class_head

    # Fuse the four heads: output columns [age | gender | handedness | class],
    # padded with one zero column (7 -> 8 lanes).
    w_head = jnp.concatenate([wa, wg, wh, wc], axis=1)                 # (32, 7)
    w_head = jnp.pad(w_head, ((0, 0), (0, OUT_W - HEAD_W)))            # (32, 8)
    b_head = jnp.concatenate([ba, bg, bh, bc], axis=0)                 # (7,)
    b_head = jnp.pad(b_head, (0, OUT_W - HEAD_W))                      # (8,)

    return {
        "w1": w1, "b1": b1[None, :],          # (7, 128), (1, 128)
        "w2": w2, "b2": b2[None, :],          # (128, 64), (1, 64)
        "w3": w3, "b3": b3[None, :],          # (64, 32), (1, 32)
        "wh": w_head, "bh": b_head[None, :],  # (32, 8),  (1, 8)
    }


@jax.jit
def model1net_forward(x, params):
    """x: (B, 7) float32 -> (age (B,1), gender (B,2), handedness (B,2), class (B,2))"""
    b = x.shape[0]
    bp = ((b + 7) // 8) * 8                     # sublane alignment only
    if bp != b:
        x = jnp.pad(x, ((0, bp - b), (0, 0)))   # elided under jit when b % 8 == 0
    tb = min(TB_MAX, bp)
    grid = (pl.cdiv(bp, tb),)

    const = lambda shape: pl.BlockSpec(shape, lambda i: (0, 0))  # weights: no re-DMA

    out = pl.pallas_call(
        _mlp_kernel,
        out_shape=jax.ShapeDtypeStruct((bp, OUT_W), jnp.float32),
        grid=grid,
        in_specs=[
            pl.BlockSpec((tb, IN_F), lambda i: (i, 0)),
            const((IN_F, H1)), const((1, H1)),
            const((H1, H2)), const((1, H2)),
            const((H2, H3)), const((1, H3)),
            const((H3, OUT_W)), const((1, OUT_W)),
        ],
        out_specs=pl.BlockSpec((tb, OUT_W), lambda i: (i, 0)),
        compiler_params=pltpu.CompilerParams(dimension_semantics=("parallel",)),
    )(x,
      params["w1"], params["b1"],
      params["w2"], params["b2"],
      params["w3"], params["b3"],
      params["wh"], params["bh"])

    out = out[:b]
    age = jnp.maximum(out[:, 0:1], 0.0)         # ReLU only on the age head
    gender = out[:, 1:3]
    handedness = out[:, 3:5]
    class_output = out[:, 5:7]
    return age, gender, handedness, class_output


def _reference(x, params):
    """Plain-JAX reference of the same computation for sanity check."""
    h = jnp.maximum(x @ params["w1"] + params["b1"][0], 0.0)
    h = jnp.maximum(h @ params["w2"] + params["b2"][0], 0.0)
    h = jnp.maximum(h @ params["w3"] + params["b3"][0], 0.0)
    y = h @ params["wh"][:, :HEAD_W] + params["bh"][0, :HEAD_W]
    age = jnp.maximum(y[:, 0:1], 0.0)
    return age, y[:, 1:3], y[:, 3:5], y[:, 5:7]


if __name__ == "__main__":
    key = jax.random.PRNGKey(0)
    pkey, xkey = jax.random.split(key)
    params = init_params(pkey)

    batch = 11   # deliberately not a multiple of 8 to exercise the ragged path
    x = jax.random.normal(xkey, (batch, IN_F), jnp.float32)

    outs = model1net_forward(x, params)
    outs = jax.block_until_ready(outs)

    refs = _reference(x, params)
    for o, r in zip(outs, refs):
        assert o.shape == r.shape, (o.shape, r.shape)
        assert jnp.allclose(o, r, atol=1e-4, rtol=1e-4), float(jnp.abs(o - r).max())

    print("KERNEL_OK")
</pallas_src>

<mosaic_0001>
module attributes {stable_mosaic.version = 11 : i64} {
  func.func @_mlp_kernel(%arg0: i32, %arg1: memref<16x7xf32, #tpu.memory_space<vmem>>, %arg2: memref<7x128xf32, #tpu.memory_space<vmem>>, %arg3: memref<1x128xf32, #tpu.memory_space<vmem>>, %arg4: memref<128x64xf32, #tpu.memory_space<vmem>>, %arg5: memref<1x64xf32, #tpu.memory_space<vmem>>, %arg6: memref<64x32xf32, #tpu.memory_space<vmem>>, %arg7: memref<1x32xf32, #tpu.memory_space<vmem>>, %arg8: memref<32x8xf32, #tpu.memory_space<vmem>>, %arg9: memref<1x8xf32, #tpu.memory_space<vmem>>, %arg10: memref<16x8xf32, #tpu.memory_space<vmem>>) attributes {dimension_semantics = [#tpu.dimension_semantics<parallel>], iteration_bounds = array<i64: 1>, scalar_prefetch = 0 : i64, scratch_operands = 0 : i64, tpu.core_type = #tpu.core_type<tc>, window_params = [{transform_indices = @transform_0, window_bounds = array<i64: 16, 7>}, {pipeline_mode = #tpu.pipeline_mode<synchronous>, transform_indices = @transform_1, window_bounds = array<i64: 7, 128>}, {pipeline_mode = #tpu.pipeline_mode<synchronous>, transform_indices = @transform_2, window_bounds = array<i64: 1, 128>}, {pipeline_mode = #tpu.pipeline_mode<synchronous>, transform_indices = @transform_3, window_bounds = array<i64: 128, 64>}, {pipeline_mode = #tpu.pipeline_mode<synchronous>, transform_indices = @transform_4, window_bounds = array<i64: 1, 64>}, {pipeline_mode = #tpu.pipeline_mode<synchronous>, transform_indices = @transform_5, window_bounds = array<i64: 64, 32>}, {pipeline_mode = #tpu.pipeline_mode<synchronous>, transform_indices = @transform_6, window_bounds = array<i64: 1, 32>}, {pipeline_mode = #tpu.pipeline_mode<synchronous>, transform_indices = @transform_7, window_bounds = array<i64: 32, 8>}, {pipeline_mode = #tpu.pipeline_mode<synchronous>, transform_indices = @transform_8, window_bounds = array<i64: 1, 8>}, {transform_indices = @transform_9, window_bounds = array<i64: 16, 8>}]} {
    %c0 = arith.constant 0 : index
    %c0_0 = arith.constant 0 : index
    %0 = vector.load %arg1[%c0, %c0_0] : memref<16x7xf32, #tpu.memory_space<vmem>>, vector<16x7xf32>
    %c0_1 = arith.constant 0 : index
    %c0_2 = arith.constant 0 : index
    %1 = vector.load %arg2[%c0_1, %c0_2] : memref<7x128xf32, #tpu.memory_space<vmem>>, vector<7x128xf32>
    %cst = arith.constant dense<0.000000e+00> : vector<16x128xf32>
    %2 = tpu.matmul %0, %1, %cst {dimension_numbers = #tpu.dot_dimension_numbers<[1], [0], [0], [1], [0, 0, 1, 1], [], []>} : vector<16x7xf32>, vector<7x128xf32>, vector<16x128xf32> -> vector<16x128xf32>
    %c0_3 = arith.constant 0 : index
    %c0_4 = arith.constant 0 : index
    %3 = vector.load %arg3[%c0_3, %c0_4] : memref<1x128xf32, #tpu.memory_space<vmem>>, vector<1x128xf32>
    %4 = vector.broadcast %3 : vector<1x128xf32> to vector<16x128xf32>
    %5 = arith.addf %2, %4 : vector<16x128xf32>
    %cst_5 = arith.constant 0.000000e+00 : f32
    %6 = vector.broadcast %cst_5 : f32 to vector<16x128xf32>
    %7 = arith.maximumf %5, %6 : vector<16x128xf32>
    %c0_6 = arith.constant 0 : index
    %c0_7 = arith.constant 0 : index
    %8 = vector.load %arg4[%c0_6, %c0_7] : memref<128x64xf32, #tpu.memory_space<vmem>>, vector<128x64xf32>
    %cst_8 = arith.constant dense<0.000000e+00> : vector<16x64xf32>
    %9 = tpu.matmul %7, %8, %cst_8 {dimension_numbers = #tpu.dot_dimension_numbers<[1], [0], [0], [1], [0, 0, 1, 1], [], []>} : vector<16x128xf32>, vector<128x64xf32>, vector<16x64xf32> -> vector<16x64xf32>
    %c0_9 = arith.constant 0 : index
    %c0_10 = arith.constant 0 : index
    %10 = vector.load %arg5[%c0_9, %c0_10] : memref<1x64xf32, #tpu.memory_space<vmem>>, vector<1x64xf32>
    %11 = vector.broadcast %10 : vector<1x64xf32> to vector<16x64xf32>
    %12 = arith.addf %9, %11 : vector<16x64xf32>
    %cst_11 = arith.constant 0.000000e+00 : f32
    %13 = vector.broadcast %cst_11 : f32 to vector<16x64xf32>
    %14 = arith.maximumf %12, %13 : vector<16x64xf32>
    %c0_12 = arith.constant 0 : index
    %c0_13 = arith.constant 0 : index
    %15 = vector.load %arg6[%c0_12, %c0_13] : memref<64x32xf32, #tpu.memory_space<vmem>>, vector<64x32xf32>
    %cst_14 = arith.constant dense<0.000000e+00> : vector<16x32xf32>
    %16 = tpu.matmul %14, %15, %cst_14 {dimension_numbers = #tpu.dot_dimension_numbers<[1], [0], [0], [1], [0, 0, 1, 1], [], []>} : vector<16x64xf32>, vector<64x32xf32>, vector<16x32xf32> -> vector<16x32xf32>
    %c0_15 = arith.constant 0 : index
    %c0_16 = arith.constant 0 : index
    %17 = vector.load %arg7[%c0_15, %c0_16] : memref<1x32xf32, #tpu.memory_space<vmem>>, vector<1x32xf32>
    %18 = vector.broadcast %17 : vector<1x32xf32> to vector<16x32xf32>
    %19 = arith.addf %16, %18 : vector<16x32xf32>
    %cst_17 = arith.constant 0.000000e+00 : f32
    %20 = vector.broadcast %cst_17 : f32 to vector<16x32xf32>
    %21 = arith.maximumf %19, %20 : vector<16x32xf32>
    %c0_18 = arith.constant 0 : index
    %c0_19 = arith.constant 0 : index
    %22 = vector.load %arg8[%c0_18, %c0_19] : memref<32x8xf32, #tpu.memory_space<vmem>>, vector<32x8xf32>
    %cst_20 = arith.constant dense<0.000000e+00> : vector<16x8xf32>
    %23 = tpu.matmul %21, %22, %cst_20 {dimension_numbers = #tpu.dot_dimension_numbers<[1], [0], [0], [1], [0, 0, 1, 1], [], []>} : vector<16x32xf32>, vector<32x8xf32>, vector<16x8xf32> -> vector<16x8xf32>
    %c0_21 = arith.constant 0 : index
    %c0_22 = arith.constant 0 : index
    %24 = vector.load %arg9[%c0_21, %c0_22] : memref<1x8xf32, #tpu.memory_space<vmem>>, vector<1x8xf32>
    %25 = vector.broadcast %24 : vector<1x8xf32> to vector<16x8xf32>
    %26 = arith.addf %23, %25 : vector<16x8xf32>
    %c0_23 = arith.constant 0 : index
    %c0_24 = arith.constant 0 : index
    %27 = vector.load %arg10[%c0_23, %c0_24] : memref<16x8xf32, #tpu.memory_space<vmem>>, vector<16x8xf32>
    tpu.vector_store %arg10[%c0_23, %c0_24], %26 {strides = array<i32>} : memref<16x8xf32, #tpu.memory_space<vmem>>, vector<16x8xf32>,
    return
  }
  func.func @transform_0(%arg0: i32) -> (i32, i32) {
    %c0_i32 = arith.constant 0 : i32
    %c0_i32_0 = arith.constant 0 : i32
    return %arg0, %c0_i32 : i32, i32
  }
  func.func @transform_1(%arg0: i32) -> (i32, i32) {
    %c0_i32 = arith.constant 0 : i32
    %c0_i32_0 = arith.constant 0 : i32
    %c0_i32_1 = arith.constant 0 : i32
    return %c0_i32, %c0_i32_0 : i32, i32
  }
  func.func @transform_2(%arg0: i32) -> (i32, i32) {
    %c0_i32 = arith.constant 0 : i32
    %c0_i32_0 = arith.constant 0 : i32
    %c0_i32_1 = arith.constant 0 : i32
    return %c0_i32, %c0_i32_0 : i32, i32
  }
  func.func @transform_3(%arg0: i32) -> (i32, i32) {
    %c0_i32 = arith.constant 0 : i32
    %c0_i32_0 = arith.constant 0 : i32
    %c0_i32_1 = arith.constant 0 : i32
    return %c0_i32, %c0_i32_0 : i32, i32
  }
  func.func @transform_4(%arg0: i32) -> (i32, i32) {
    %c0_i32 = arith.constant 0 : i32
    %c0_i32_0 = arith.constant 0 : i32
    %c0_i32_1 = arith.constant 0 : i32
    return %c0_i32, %c0_i32_0 : i32, i32
  }
  func.func @transform_5(%arg0: i32) -> (i32, i32) {
    %c0_i32 = arith.constant 0 : i32
    %c0_i32_0 = arith.constant 0 : i32
    %c0_i32_1 = arith.constant 0 : i32
    return %c0_i32, %c0_i32_0 : i32, i32
  }
  func.func @transform_6(%arg0: i32) -> (i32, i32) {
    %c0_i32 = arith.constant 0 : i32
    %c0_i32_0 = arith.constant 0 : i32
    %c0_i32_1 = arith.constant 0 : i32
    return %c0_i32, %c0_i32_0 : i32, i32
  }
  func.func @transform_7(%arg0: i32) -> (i32, i32) {
    %c0_i32 = arith.constant 0 : i32
    %c0_i32_0 = arith.constant 0 : i32
    %c0_i32_1 = arith.constant 0 : i32
    return %c0_i32, %c0_i32_0 : i32, i32
  }
  func.func @transform_8(%arg0: i32) -> (i32, i32) {
    %c0_i32 = arith.constant 0 : i32
    %c0_i32_0 = arith.constant 0 : i32
    %c0_i32_1 = arith.constant 0 : i32
    return %c0_i32, %c0_i32_0 : i32, i32
  }
  func.func @transform_9(%arg0: i32) -> (i32, i32) {
    %c0_i32 = arith.constant 0 : i32
    %c0_i32_0 = arith.constant 0 : i32
    return %arg0, %c0_i32 : i32, i32
  }
}

</mosaic_0001>

<llo_original>
// kernel: model1net_forward.1
$region0: #{model1net_forward.1}
  #allocation0 [shape = 'u32[]', space=smem, size = 0x4, offset = 0x4, fixed_abs, tag = 'smem constant byte address 0x4 - core index']
  #allocation1 [shape = 'u32[72,128]{1,0:T(1,128)}', space=vmem, size = 0x9000, scoped, tag = 'internal scratch']
  %s0 = inlined_call_operand.vmem [shape: f32[16,7], index: 0, kind: input, shape index: {}]
  %s1 = inlined_call_operand.vmem [shape: f32[7,128], index: 1, kind: input, shape index: {}]
  %s2 = inlined_call_operand.vmem [shape: f32[1,128], index: 2, kind: input, shape index: {}]
  %s3 = inlined_call_operand.vmem [shape: f32[128,64], index: 3, kind: input, shape index: {}]
  %s4 = inlined_call_operand.vmem [shape: f32[1,64], index: 4, kind: input, shape index: {}]
  %s5 = inlined_call_operand.vmem [shape: f32[64,32], index: 5, kind: input, shape index: {}]
  %s6 = inlined_call_operand.vmem [shape: f32[1,32], index: 6, kind: input, shape index: {}]
  %s7 = inlined_call_operand.vmem [shape: f32[32,8], index: 7, kind: input, shape index: {}]
  %s8 = inlined_call_operand.vmem [shape: f32[1,8], index: 8, kind: input, shape index: {}]
  %s9 = inlined_call_operand.vmem [shape: f32[16,8], index: 9, kind: output, shape index: {}]
  %s10 = sld [smem:[#allocation0]]
  $region46: #{model1net_forward.1} parent=0
    _
  %s12 = ssub.s32 1, %s10
  %s13 = scalar_select 0, %s12, %s10
  // Predicated region
  $region2: #{model1net_forward.1} parent=0 // pred_check
    _
  $region3: #{model1net_forward.1} parent=0 // pred_check_branch
    %15 = sbr.rel (0) target = $region5
  $region4: #{model1net_forward.1} parent=0 // pred_region
    _
  $region5: #{model1net_forward.1} parent=0 // pred_fallthru
    _
  // Predicated region
  $region6: #{model1net_forward.1} parent=0 // pred_check
    _
  $region7: #{model1net_forward.1} parent=0 // pred_check_branch
    %17 = sbr.rel (0) target = $region9
  $region8: #{model1net_forward.1} parent=0 // pred_region
    _
  $region9: #{model1net_forward.1} parent=0 // pred_fallthru
    _
  // Predicated region
  $region10: #{model1net_forward.1} parent=0 // pred_check
    _
  $region11: #{model1net_forward.1} parent=0 // pred_check_branch
    %19 = sbr.rel (0) target = $region13
  $region12: #{model1net_forward.1} parent=0 // pred_region
    _
  $region13: #{model1net_forward.1} parent=0 // pred_fallthru
    _
  // Predicated region
  $region14: #{model1net_forward.1} parent=0 // pred_check
    _
  $region15: #{model1net_forward.1} parent=0 // pred_check_branch
    %21 = sbr.rel (0) target = $region17
  $region16: #{model1net_forward.1} parent=0 // pred_region
    _
  $region17: #{model1net_forward.1} parent=0 // pred_fallthru
    _
  // Predicated region
  $region18: #{model1net_forward.1} parent=0 // pred_check
    _
  $region19: #{model1net_forward.1} parent=0 // pred_check_branch
    %23 = sbr.rel (0) target = $region21
  $region20: #{model1net_forward.1} parent=0 // pred_region
    _
  $region21: #{model1net_forward.1} parent=0 // pred_fallthru
    _
  // Predicated region
  $region22: #{model1net_forward.1} parent=0 // pred_check
    _
  $region23: #{model1net_forward.1} parent=0 // pred_check_branch
    %25 = sbr.rel (0) target = $region25
  $region24: #{model1net_forward.1} parent=0 // pred_region
    _
  $region25: #{model1net_forward.1} parent=0 // pred_fallthru
    _
  // Predicated region
  $region26: #{model1net_forward.1} parent=0 // pred_check
    _
  $region27: #{model1net_forward.1} parent=0 // pred_check_branch
    %27 = sbr.rel (0) target = $region29
  $region28: #{model1net_forward.1} parent=0 // pred_region
    _
  $region29: #{model1net_forward.1} parent=0 // pred_fallthru
    _
  // Predicated region
  $region30: #{model1net_forward.1} parent=0 // pred_check
    _
  $region31: #{model1net_forward.1} parent=0 // pred_check_branch
    %29 = sbr.rel (0) target = $region33
  $region32: #{model1net_forward.1} parent=0 // pred_region
    _
  $region33: #{model1net_forward.1} parent=0 // pred_fallthru
    _
  // Predicated region
  $region34: #{model1net_forward.1} parent=0 // pred_check
    _
  $region35: #{model1net_forward.1} parent=0 // pred_check_branch
    %31 = sbr.rel (0) target = $region37
  $region36: #{model1net_forward.1} parent=0 // pred_region
    _
  $region37: #{model1net_forward.1} parent=0 // pred_fallthru
    _
  %v32 = vld [vmem:[%s0] sm:$0xff]
  %v33 = vld [vmem:[%s0 + $0x8] sm:$0xff]
  %v34 = vld [vmem:[%s1] sm:$0x7f]
  %v35 = vld [vmem:[%s2] sm:$0x1]
  %v37 = vperm.slane %v35, 0
  %vm39 = vcmask 56320
  %v41 = vsel %vm39, %v32, 0
  %v44 = vsel %vm39, %v33, 0
  %vm46 = vcmask 1046528
  %v48 = vsel %vm46, %v34, 0
  %50 = vmatpush.msra.mxu0 0.0
  %51 = vmatpush.msra.mxu0 0.0
  %52 = vmatpush.msra.mxu0 0.0
  %53 = vmatpush.msra.mxu0 0.0
  %54 = vmatpush.msra.mxu0 0.0
  %55 = vmatpush.msra.mxu0 0.0
  %56 = vmatpush.msra.mxu0 0.0
  %57 = vmatpush.msra.mxu0 0.0
  %58 = vmatpush.msra.mxu0 0.0
  %59 = vmatpush.msra.mxu0 0.0
  %60 = vmatpush.msra.mxu0 0.0
  %61 = vmatpush.msra.mxu0 0.0
  %62 = vmatpush.msra.mxu0 0.0
  %63 = vmatpush.msra.mxu0 0.0
  %64 = vmatpush.msra.mxu0 0.0
  %65 = vmatpush.msra.mxu0 %v48
  %66 = vmatmul.f32.gmra.mxu0 %v41
  %v67 = vpop.f32.mrf.mxu0
  %v68 = vadd.f32 %v37, %v67
  %69 = vmatmul.f32.gmra.mxu0 %v44
  %v70 = vpop.f32.mrf.mxu0
  %v71 = vadd.f32 %v37, %v70
  %72 = vdwg.mxu0
  %v73 = vmax.f32 %v68, 0.0
  %v74 = vmax.f32 %v71, 0.0
  %v75 = vld [vmem:[%s3] sm:$0xff]
  %v76 = vld [vmem:[%s3 + $0x8] sm:$0xff]
  %v77 = vld [vmem:[%s3 + $0x10] sm:$0xff]
  %v78 = vld [vmem:[%s3 + $0x18] sm:$0xff]
  %v79 = vld [vmem:[%s3 + $0x20] sm:$0xff]
  %v80 = vld [vmem:[%s3 + $0x28] sm:$0xff]
  %v81 = vld [vmem:[%s3 + $0x30] sm:$0xff]
  %v82 = vld [vmem:[%s3 + $0x38] sm:$0xff]
  %v83 = vld [vmem:[%s3 + $0x40] sm:$0xff]
  %v84 = vld [vmem:[%s3 + $0x48] sm:$0xff]
  %v85 = vld [vmem:[%s3 + $0x50] sm:$0xff]
  %v86 = vld [vmem:[%s3 + $0x58] sm:$0xff]
  %v87 = vld [vmem:[%s3 + $0x60] sm:$0xff]
  %v88 = vld [vmem:[%s3 + $0x68] sm:$0xff]
  %v89 = vld [vmem:[%s3 + $0x70] sm:$0xff]
  %v90 = vld [vmem:[%s3 + $0x78] sm:$0xff]
  %v91 = vld [vmem:[%s4] sm:$0x1]
  %v93 = vperm.slane %v91, 0
  %95 = vmatpush.msra.mxu0 %v90
  %96 = vmatpush.msra.mxu0 %v89
  %97 = vmatpush.msra.mxu0 %v88
  %98 = vmatpush.msra.mxu0 %v87
  %99 = vmatpush.msra.mxu0 %v86
  %100 = vmatpush.msra.mxu0 %v85
  %101 = vmatpush.msra.mxu0 %v84
  %102 = vmatpush.msra.mxu0 %v83
  %103 = vmatpush.msra.mxu0 %v82
  %104 = vmatpush.msra.mxu0 %v81
  %105 = vmatpush.msra.mxu0 %v80
  %106 = vmatpush.msra.mxu0 %v79
  %107 = vmatpush.msra.mxu0 %v78
  %108 = vmatpush.msra.mxu0 %v77
  %109 = vmatpush.msra.mxu0 %v76
  %110 = vmatpush.msra.mxu0 %v75
  %111 = vmatmul.f32.gmra.mxu0 %v73
  %v112 = vpop.f32.mrf.mxu0
  %v113 = vadd.f32 %v93, %v112
  %114 = vmatmul.f32.gmra.mxu0 %v74
  %v115 = vpop.f32.mrf.mxu0
  %v116 = vadd.f32 %v93, %v115
  %117 = vdwg.mxu0
  %v118 = vmax.f32 %v113, 0.0
  %v119 = vmax.f32 %v116, 0.0
  %v120 = vld [vmem:[%s5] sm:$0xff]
  %v121 = vld [vmem:[%s5 + $0x8] sm:$0xff]
  %v122 = vld [vmem:[%s5 + $0x10] sm:$0xff]
  %v123 = vld [vmem:[%s5 + $0x18] sm:$0xff]
  %v124 = vld [vmem:[%s5 + $0x20] sm:$0xff]
  %v125 = vld [vmem:[%s5 + $0x28] sm:$0xff]
  %v126 = vld [vmem:[%s5 + $0x30] sm:$0xff]
  %v127 = vld [vmem:[%s5 + $0x38] sm:$0xff]
  %v128 = vld [vmem:[%s6] sm:$0x1]
  %v130 = vperm.slane %v128, 0
  %vm132 = vcmask 523264
  %v134 = vsel %vm132, %v118, 0
  %v137 = vsel %vm132, %v119, 0
  %139 = vmatpush.msra.mxu0 0.0
  %140 = vmatpush.msra.mxu0 0.0
  %141 = vmatpush.msra.mxu0 0.0
  %142 = vmatpush.msra.mxu0 0.0
  %143 = vmatpush.msra.mxu0 0.0
  %144 = vmatpush.msra.mxu0 0.0
  %145 = vmatpush.msra.mxu0 0.0
  %146 = vmatpush.msra.mxu0 0.0
  %147 = vmatpush.msra.mxu0 %v127
  %148 = vmatpush.msra.mxu0 %v126
  %149 = vmatpush.msra.mxu0 %v125
  %150 = vmatpush.msra.mxu0 %v124
  %151 = vmatpush.msra.mxu0 %v123
  %152 = vmatpush.msra.mxu0 %v122
  %153 = vmatpush.msra.mxu0 %v121
  %154 = vmatpush.msra.mxu0 %v120
  %155 = vmatmul.f32.gmra.mxu0 %v134
  %v156 = vpop.f32.mrf.mxu0
  %v157 = vadd.f32 %v130, %v156
  %158 = vmatmul.f32.gmra.mxu0 %v137
  %v159 = vpop.f32.mrf.mxu0
  %v160 = vadd.f32 %v130, %v159
  %161 = vdwg.mxu0
  %v162 = vmax.f32 %v157, 0.0
  %v163 = vmax.f32 %v160, 0.0
  %v164 = vld [vmem:[%s7] sm:$0xff]
  %v165 = vld [vmem:[%s7 + $0x8] sm:$0xff]
  %v166 = vld [vmem:[%s7 + $0x10] sm:$0xff]
  %v167 = vld [vmem:[%s7 + $0x18] sm:$0xff]
  %v168 = vld [vmem:[%s8] sm:$0x1]
  %v170 = vperm.slane %v168, 0
  %vm172 = vcmask 261120
  %v174 = vsel %vm172, %v162, 0
  %v177 = vsel %vm172, %v163, 0
  %179 = vmatpush.msra.mxu0 0.0
  %180 = vmatpush.msra.mxu0 0.0
  %181 = vmatpush.msra.mxu0 0.0
  %182 = vmatpush.msra.mxu0 0.0
  %183 = vmatpush.msra.mxu0 0.0
  %184 = vmatpush.msra.mxu0 0.0
  %185 = vmatpush.msra.mxu0 0.0
  %186 = vmatpush.msra.mxu0 0.0
  %187 = vmatpush.msra.mxu0 0.0
  %188 = vmatpush.msra.mxu0 0.0
  %189 = vmatpush.msra.mxu0 0.0
  %190 = vmatpush.msra.mxu0 0.0
  %191 = vmatpush.msra.mxu0 %v167
  %192 = vmatpush.msra.mxu0 %v166
  %193 = vmatpush.msra.mxu0 %v165
  %194 = vmatpush.msra.mxu0 %v164
  %195 = vmatmul.f32.gmra.mxu0 %v174
  %v196 = vpop.f32.mrf.mxu0
  %v197 = vadd.f32 %v170, %v196
  %198 = vmatmul.f32.gmra.mxu0 %v177
  %v199 = vpop.f32.mrf.mxu0
  %v200 = vadd.f32 %v170, %v199
  %201 = vdwg.mxu0
  %vm202 = vcmask 64512
  %203 = vst.msk [vmem:[%s9] sm:$0xff] %vm202, %v197
  %204 = vst.msk [vmem:[%s9 + $0x8] sm:$0xff] %vm202, %v200
  // Predicated region
  $region38: #{model1net_forward.1} parent=0 // pred_check
    _
  $region39: #{model1net_forward.1} parent=0 // pred_check_branch
    %206 = sbr.rel (0) target = $region41
  $region40: #{model1net_forward.1} parent=0 // pred_region
    _
  $region41: #{model1net_forward.1} parent=0 // pred_fallthru
    _
  // Predicated region
  $region42: #{model1net_forward.1} parent=0 // pred_check
    _
  $region43: #{model1net_forward.1} parent=0 // pred_check_branch
    %208 = sbr.rel (0) target = $region45
  $region44: #{model1net_forward.1} parent=0 // pred_region
    _
  $region45: #{model1net_forward.1} parent=0 // pred_fallthru
    _

</llo_original>
